<compile_context>
chip_gen: v7x
topology: tpu7x:2x2x1
jax: 0.10.0
libtpu: 0.0.40
codegen_flags: <defaults>
</compile_context>

<pallas_src>
import jax
import jax.numpy as jnp
from jax.experimental import pallas as pl
from jax.experimental.pallas import tpu as pltpu


def _round_up(x, m):
    return ((x + m - 1) // m) * m


def _pick_tile(dim, candidates=(512, 256, 128)):
    """Largest candidate that evenly divides `dim` (dim is a multiple of 128)."""
    for c in candidates:
        if dim % c == 0:
            return c
    return candidates[-1]


# ----------------------------------------------------------------------------
# Kernels
# ----------------------------------------------------------------------------
def _permute_linear_fullk_kernel(x_ref, wt_ref, b_ref, o_ref):
    # x_ref : (C_pad, tm) slice of this batch's (C, S) slab (batch squeezed).
    # wt_ref: (C_pad, tn) slice of W^T (C, O) -- MXU-native RHS orientation.
    # b_ref : (1, tn) f32 bias slice.
    # o_ref : (tm, tn) output tile (lane-dense, unmasked stores).
    #
    # Contract LHS dim 0 with RHS dim 0: 'cs,co->so'.  Contracting the LHS over
    # its leading dim IS the fused permute(0, 2, 1); no K grid axis, no
    # accumulator: the full-C dot result + bias is stored directly.
    acc = jax.lax.dot_general(
        x_ref[...], wt_ref[...],
        dimension_numbers=(((0,), (0,)), ((), ())),
        preferred_element_type=jnp.float32,
    )
    o_ref[...] = (acc + b_ref[...].astype(jnp.float32)).astype(o_ref.dtype)


def _permute_linear_ktiled_kernel(x_ref, wt_ref, b_ref, o_ref, acc_ref):
    # Fallback for very large C: K-tiled accumulation (K axis innermost).
    k = pl.program_id(3)

    @pl.when(k == 0)
    def _():
        acc_ref[...] = jnp.zeros_like(acc_ref)

    acc_ref[...] += jax.lax.dot_general(
        x_ref[...], wt_ref[...],
        dimension_numbers=(((0,), (0,)), ((), ())),
        preferred_element_type=jnp.float32,
    )

    @pl.when(k == pl.num_programs(3) - 1)
    def _():
        o_ref[...] = (acc_ref[...] + b_ref[...].astype(jnp.float32)).astype(o_ref.dtype)


# ----------------------------------------------------------------------------
# Wrapper
# ----------------------------------------------------------------------------
def permute_linear(x, w, b, *, compute_dtype=jnp.bfloat16, k_max=None,
                   force_pallas=False):
    """x: (B, C, S), w: (O, C), b: (O,).  Returns (B, S, O) = permute(x) @ w.T + b."""
    B, C, S = x.shape
    O = w.shape[0]
    out_dtype = x.dtype

    # Small-problem fallback: padding to MXU tiles would waste >99% of the work
    # and all the kernel-launch/pipeline overhead — a fused XLA op is faster.
    if not force_pallas and (S * O * C) <= (1 << 20):
        return (jnp.einsum("bcs,oc->bso", x, w) + b).astype(out_dtype)

    # --- wrapper-side layout plumbing (one-time, outside the hot loop) ------
    k_budget = 2048 if k_max is None else k_max
    sub = 16 if compute_dtype == jnp.bfloat16 else 8   # sublane packing of C dim

    C_al = _round_up(C, sub)
    if C_al <= k_budget:
        # Preferred path: the whole contraction fits one tile -> no K grid axis.
        tk, k_grid, C_pad = C_al, None, C_al
    else:
        # Robust large-C path: cap tk and pad C to a tile multiple.
        tk = min(512, max(128, (k_budget // 128) * 128))
        C_pad = _round_up(C, tk)
        k_grid = C_pad // tk

    S_pad = _round_up(S, 128)   # lane dim of x tile, sublane dim of out tile
    O_pad = _round_up(O, 128)   # lane dim of W^T / out tiles (lane-dense stores)

    # Zero-padded C rows contribute nothing to the contraction; padded S/O are
    # sliced off below.  Skip pads entirely when already aligned.
    pc, ps, po = C_pad - C, S_pad - S, O_pad - O
    x_c = x.astype(compute_dtype)
    x_p = jnp.pad(x_c, ((0, 0), (0, pc), (0, ps))) if (pc or ps) else x_c
    wt = w.astype(compute_dtype).T                                  # (C, O)
    wt_p = jnp.pad(wt, ((0, pc), (0, po))) if (pc or po) else wt
    b_p = (jnp.pad(b, (0, po)) if po else b).astype(jnp.float32).reshape(1, O_pad)

    # --- tile selection ------------------------------------------------------
    tm = _pick_tile(S_pad)
    tn = _pick_tile(O_pad)

    # VMEM budget: 2 operands x 2 buffers + 2 output buffers (+ acc) <= ~20 MiB
    # so the kernel is safe on v7x's 64 MiB VMEM as well as v5e/v6e.
    esz = jnp.dtype(compute_dtype).itemsize
    osz = jnp.dtype(out_dtype).itemsize

    def _footprint(tm_, tn_):
        tk_ = C_pad if k_grid is None else tk
        scratch = 0 if k_grid is None else tm_ * tn_ * 4
        return 2 * (tk_ * tm_ * esz + tk_ * tn_ * esz + tm_ * tn_ * osz) + scratch

    while _footprint(tm, tn) > (20 << 20) and max(tm, tn) > 128:
        if tn >= tm and tn > 128:
            tn //= 2
        elif tm > 128:
            tm //= 2
        else:
            tn //= 2

    # Megacore-occupancy guard (v7x has 2 TCs): ensure >= 2 parallel blocks.
    if B * (S_pad // tm) * (O_pad // tn) < 2:
        if tm > 128:
            tm //= 2
        elif tn > 128:
            tn //= 2

    compiler_params = pltpu.CompilerParams(
        dimension_semantics=(("parallel", "parallel", "parallel")
                             if k_grid is None else
                             ("parallel", "parallel", "parallel", "arbitrary")),
        vmem_limit_bytes=32 * 1024 * 1024,
    )

    if k_grid is None:
        # ---- full-K path: grid = (B, M, N), no accumulator ------------------
        grid = (B, S_pad // tm, O_pad // tn)
        out_p = pl.pallas_call(
            _permute_linear_fullk_kernel,
            out_shape=jax.ShapeDtypeStruct((B, S_pad, O_pad), out_dtype),
            grid_spec=pltpu.PrefetchScalarGridSpec(
                num_scalar_prefetch=0,
                grid=grid,
                in_specs=[
                    # x: batch squeezed, full-C (C_pad, tm) tile of the (C, S)
                    # slab; independent of j -> revisited (no re-DMA) across N.
                    pl.BlockSpec((None, C_pad, tm), lambda bi, i, j: (bi, 0, i)),
                    # W^T: independent of batch / M axes.
                    pl.BlockSpec((C_pad, tn), lambda bi, i, j: (0, j)),
                    # bias
                    pl.BlockSpec((1, tn), lambda bi, i, j: (0, j)),
                ],
                out_specs=pl.BlockSpec((None, tm, tn), lambda bi, i, j: (bi, i, j)),
            ),
            compiler_params=compiler_params,
        )(x_p, wt_p, b_p)
    else:
        # ---- large-C fallback: K-tiled accumulation, K innermost ------------
        grid = (B, S_pad // tm, O_pad // tn, k_grid)
        out_p = pl.pallas_call(
            _permute_linear_ktiled_kernel,
            out_shape=jax.ShapeDtypeStruct((B, S_pad, O_pad), out_dtype),
            grid_spec=pltpu.PrefetchScalarGridSpec(
                num_scalar_prefetch=0,
                grid=grid,
                in_specs=[
                    pl.BlockSpec((None, tk, tm), lambda bi, i, j, k: (bi, k, i)),
                    pl.BlockSpec((tk, tn), lambda bi, i, j, k: (k, j)),
                    pl.BlockSpec((1, tn), lambda bi, i, j, k: (0, j)),
                ],
                out_specs=pl.BlockSpec((None, tm, tn), lambda bi, i, j, k: (bi, i, j)),
                scratch_shapes=[pltpu.VMEM((tm, tn), jnp.float32)],
            ),
            compiler_params=compiler_params,
        )(x_p, wt_p, b_p)

    return out_p if (ps == 0 and po == 0) else out_p[:, :S, :O]


if __name__ == "__main__":
    key = jax.random.PRNGKey(0)
    kx, kw, kb = jax.random.split(key, 3)

    # Shapes implied by the module: x1 = randn(1, 2, 2); Linear(2, 2).
    B, C, S, O = 1, 2, 2, 2
    x1 = jax.random.normal(kx, (B, C, S), dtype=jnp.float32)
    weight = jax.random.uniform(kw, (O, C), dtype=jnp.float32)
    bias = jax.random.uniform(kb, (O,), dtype=jnp.float32, minval=-0.5, maxval=0.5)

    ref = jnp.einsum("bcs,oc->bso", x1, weight) + bias

    # (a) Tiny problem -> small-problem XLA fallback path.
    out_a = jax.block_until_ready(permute_linear(x1, weight, bias))
    assert out_a.shape == (B, S, O)
    assert jnp.allclose(out_a, ref, atol=1e-5, rtol=1e-5)

    # (b) Same tiny problem forced through the padded full-K Pallas kernel in
    #     f32 compute -> exact match against the reference.
    out_b = jax.block_until_ready(
        permute_linear(x1, weight, bias, compute_dtype=jnp.float32,
                       force_pallas=True))
    assert out_b.shape == (B, S, O)
    assert jnp.allclose(out_b, ref, atol=1e-5, rtol=1e-5)

    # (c) Moderate shapes: full-K Pallas path with bf16 operands / f32 accum,
    #     exercising M/N tiling, padding/strip and megacore-parallel grid.
    B2, C2, S2, O2 = 2, 384, 200, 160
    k2x, k2w, k2b = jax.random.split(jax.random.PRNGKey(1), 3)
    x2 = jax.random.normal(k2x, (B2, C2, S2), dtype=jnp.float32)
    w2 = jax.random.normal(k2w, (O2, C2), dtype=jnp.float32) * 0.05
    b2 = jax.random.normal(k2b, (O2,), dtype=jnp.float32)
    ref2 = jnp.einsum("bcs,oc->bso", x2, w2) + b2
    out_c = jax.block_until_ready(permute_linear(x2, w2, b2))
    assert out_c.shape == (B2, S2, O2)
    assert jnp.allclose(out_c, ref2, atol=3e-2, rtol=3e-2)

    # (d) Same problem forced through the large-C K-tiled accumulator fallback
    #     (k_max=128 -> tk=128, 3 reduction steps) to validate that path too.
    out_d = jax.block_until_ready(permute_linear(x2, w2, b2, k_max=128))
    assert out_d.shape == (B2, S2, O2)
    assert jnp.allclose(out_d, ref2, atol=3e-2, rtol=3e-2)

    # TODO(synk): v3..v5 of the PyTorch module (second F.linear with a conv
    # weight, unsqueeze, BatchNorm2d) are dead code w.r.t. the returned value
    # and are intentionally not implemented.
    print("KERNEL_OK")
</pallas_src>

<mosaic_0001>
module attributes {stable_mosaic.version = 11 : i64} {
  func.func @_permute_linear_fullk_kernel(%arg0: i32, %arg1: i32, %arg2: i32, %arg3: memref<1x8x128xf32, #tpu.memory_space<vmem>>, %arg4: memref<8x128xf32, #tpu.memory_space<vmem>>, %arg5: memref<1x128xf32, #tpu.memory_space<vmem>>, %arg6: memref<1x128x128xf32, #tpu.memory_space<vmem>>) attributes {dimension_semantics = [#tpu.dimension_semantics<parallel>, #tpu.dimension_semantics<parallel>, #tpu.dimension_semantics<parallel>], iteration_bounds = array<i64: 1, 1, 1>, scalar_prefetch = 0 : i64, scratch_operands = 0 : i64, tpu.core_type = #tpu.core_type<tc>, window_params = [{transform_indices = @transform_0, window_bounds = array<i64: 1, 8, 128>}, {transform_indices = @transform_1, window_bounds = array<i64: 8, 128>}, {transform_indices = @transform_2, window_bounds = array<i64: 1, 128>}, {transform_indices = @transform_3, window_bounds = array<i64: 1, 128, 128>}]} {
    %c0 = arith.constant 0 : index
    %c0_0 = arith.constant 0 : index
    %c0_1 = arith.constant 0 : index
    %0 = vector.load %arg3[%c0, %c0_0, %c0_1] : memref<1x8x128xf32, #tpu.memory_space<vmem>>, vector<1x8x128xf32>
    %1 = vector.shape_cast %0 : vector<1x8x128xf32> to vector<8x128xf32>
    %c0_2 = arith.constant 0 : index
    %c0_3 = arith.constant 0 : index
    %2 = vector.load %arg4[%c0_2, %c0_3] : memref<8x128xf32, #tpu.memory_space<vmem>>, vector<8x128xf32>
    %cst = arith.constant dense<0.000000e+00> : vector<128x128xf32>
    %3 = tpu.matmul %1, %2, %cst {dimension_numbers = #tpu.dot_dimension_numbers<[0], [0], [1], [1], [0, 1, 1, 1], [], []>} : vector<8x128xf32>, vector<8x128xf32>, vector<128x128xf32> -> vector<128x128xf32>
    %c0_4 = arith.constant 0 : index
    %c0_5 = arith.constant 0 : index
    %4 = vector.load %arg5[%c0_4, %c0_5] : memref<1x128xf32, #tpu.memory_space<vmem>>, vector<1x128xf32>
    %5 = vector.broadcast %4 : vector<1x128xf32> to vector<128x128xf32>
    %6 = arith.addf %3, %5 : vector<128x128xf32>
    %c0_6 = arith.constant 0 : index
    %c0_7 = arith.constant 0 : index
    %c0_8 = arith.constant 0 : index
    %7 = vector.load %arg6[%c0_6, %c0_7, %c0_8] : memref<1x128x128xf32, #tpu.memory_space<vmem>>, vector<1x128x128xf32>
    %8 = vector.shape_cast %7 : vector<1x128x128xf32> to vector<128x128xf32>
    %9 = vector.shape_cast %6 : vector<128x128xf32> to vector<1x128x128xf32>
    tpu.vector_store %arg6[%c0_6, %c0_7, %c0_8], %9 {strides = array<i32>} : memref<1x128x128xf32, #tpu.memory_space<vmem>>, vector<1x128x128xf32>,
    return
  }
  func.func @transform_0(%arg0: i32, %arg1: i32, %arg2: i32) -> (i32, i32, i32) {
    %c0_i32 = arith.constant 0 : i32
    %c0_i32_0 = arith.constant 0 : i32
    return %arg0, %c0_i32, %arg1 : i32, i32, i32
  }
  func.func @transform_1(%arg0: i32, %arg1: i32, %arg2: i32) -> (i32, i32) {
    %c0_i32 = arith.constant 0 : i32
    %c0_i32_0 = arith.constant 0 : i32
    return %c0_i32, %arg2 : i32, i32
  }
  func.func @transform_2(%arg0: i32, %arg1: i32, %arg2: i32) -> (i32, i32) {
    %c0_i32 = arith.constant 0 : i32
    %c0_i32_0 = arith.constant 0 : i32
    return %c0_i32, %arg2 : i32, i32
  }
  func.func @transform_3(%arg0: i32, %arg1: i32, %arg2: i32) -> (i32, i32, i32) {
    %c0_i32 = arith.constant 0 : i32
    return %arg0, %arg1, %arg2 : i32, i32, i32
  }
}

</mosaic_0001>

<llo_original>
// kernel: tpu_custom_call.1
$region0: #{tpu_custom_call.1}
  #allocation0 [shape = 'u32[]', space=smem, size = 0x4, offset = 0x4, fixed_abs, tag = 'smem constant byte address 0x4 - core index']
  #allocation1 [shape = 'u32[144,128]{1,0:T(1,128)}', space=vmem, size = 0x12000, scoped, tag = 'internal scratch']
  %s0 = inlined_call_operand.hbm [shape: f32[1,8,128], index: 0, kind: input, shape index: {}]
  %s1 = inlined_call_operand.hbm [shape: f32[8,128], index: 1, kind: input, shape index: {}]
  %s2 = inlined_call_operand.vmem [shape: f32[1,128], index: 2, kind: input, shape index: {}]
  %s3 = inlined_call_operand.hbm [shape: f32[1,128,128], index: 3, kind: output, shape index: {}]
  %s4 = sld [smem:[#allocation0]]
  $region30: #{tpu_custom_call.1} parent=0
    _
  %s6 = ssub.s32 1, %s4
  %s7 = scalar_select 0, %s6, %s4
  $region1: #{tpu_custom_call.1} parent=0
    #allocation2 [shape = 'u8[4096]{0}', space=vmem, size = 0x1000, scoped, tag = 'input window, operand 0, single buffered']
    #allocation3 [shape = 's32[1]{0}', space=sflag, size = 0x4, scoped, tag = 'scoped memory for tpu_custom_call.1']
    #allocation4 [shape = 's32[1]{0}', space=sflag, size = 0x4, scoped, tag = 'scoped memory for tpu_custom_call.1']
    #allocation5 [shape = 'u8[4096]{0}', space=vmem, size = 0x1000, scoped, tag = 'input window, operand 1, single buffered']
    #allocation6 [shape = 's32[1]{0}', space=sflag, size = 0x4, scoped, tag = 'scoped memory for tpu_custom_call.1']
    #allocation7 [shape = 'u8[65536]{0}', space=vmem, size = 0x10000, scoped, tag = 'output window, operand 0, single buffered']
    %8 = vsyncpa [#allocation3], 0
    %9 = vsyncpa [#allocation6], 0
    %10 = vsyncpa [#allocation4], 0
    // Predicated region
    $region2: #{tpu_custom_call.1} parent=1 // pred_check
      _
    $region3: #{tpu_custom_call.1} parent=1 // pred_check_branch
      %12 = sbr.rel (0) target = $region5
    $region4: #{tpu_custom_call.1} parent=1 // pred_region
      %s14 = ssub.s32 128, 128
      %15 = vsyncadd [#allocation3], %s14
      %s17 = sshll.u32 [#allocation2], 4
      %s18 = int_to_ptr.vmem [resolvable:$true] %s17
      %20 = dma.hbm_to_vmem [thread:$0]  %s0, 128, %s18, [#allocation3]
    $region5: #{tpu_custom_call.1} parent=1 // pred_fallthru
      _
    // Predicated region
    $region6: #{tpu_custom_call.1} parent=1 // pred_check
      _
    $region7: #{tpu_custom_call.1} parent=1 // pred_check_branch
      %22 = sbr.rel (0) target = $region9
    $region8: #{tpu_custom_call.1} parent=1 // pred_region
      %s24 = ssub.s32 128, 128
      %25 = vsyncadd [#allocation6], %s24
      %s27 = sshll.u32 [#allocation5], 4
      %s28 = int_to_ptr.vmem [resolvable:$true] %s27
      %30 = dma.hbm_to_vmem [thread:$0]  %s1, 128, %s28, [#allocation6]
    $region9: #{tpu_custom_call.1} parent=1 // pred_fallthru
      _
    // Predicated region
    $region10: #{tpu_custom_call.1} parent=1 // pred_check
      _
    $region11: #{tpu_custom_call.1} parent=1 // pred_check_branch
      %32 = sbr.rel (0) target = $region13
    $region12: #{tpu_custom_call.1} parent=1 // pred_region
      _
    $region13: #{tpu_custom_call.1} parent=1 // pred_fallthru
      _
    // Predicated region
    $region14: #{tpu_custom_call.1} parent=1 // pred_check
      _
    $region15: #{tpu_custom_call.1} parent=1 // pred_check_branch
      %34 = sbr.rel (0) target = $region17
    $region16: #{tpu_custom_call.1} parent=1 // pred_region
      %35 = dma.done [#allocation3], 128
    $region17: #{tpu_custom_call.1} parent=1 // pred_fallthru
      _
    // Predicated region
    $region18: #{tpu_custom_call.1} parent=1 // pred_check
      _
    $region19: #{tpu_custom_call.1} parent=1 // pred_check_branch
      %37 = sbr.rel (0) target = $region21
    $region20: #{tpu_custom_call.1} parent=1 // pred_region
      %38 = dma.done [#allocation6], 128
    $region21: #{tpu_custom_call.1} parent=1 // pred_fallthru
      _
    %v39 = vld [vmem:[#allocation2] sm:$0xff]
    %v40 = vld [vmem:[#allocation5] sm:$0xff]
    %v41 = vld [vmem:[%s2] sm:$0x1]
    %v43 = vlaneseq
    %v44 = vshrl.u32 %v43, 7
    %v45 = vsub.s32 0, %v44
    %v46 = vrot.slane %v41, %v45
    %48 = vxpose.xlu0.b32.start [1/16] %v39, 128
    %49 = vxpose.xlu0.b32.cont [2/16] 0.0, 128
    %50 = vxpose.xlu0.b32.cont [3/16] 0.0, 128
    %51 = vxpose.xlu0.b32.cont [4/16] 0.0, 128
    %52 = vxpose.xlu0.b32.cont [5/16] 0.0, 128
    %53 = vxpose.xlu0.b32.cont [6/16] 0.0, 128
    %54 = vxpose.xlu0.b32.cont [7/16] 0.0, 128
    %55 = vxpose.xlu0.b32.cont [8/16] 0.0, 128
    %56 = vxpose.xlu0.b32.cont [9/16] 0.0, 128
    %57 = vxpose.xlu0.b32.cont [10/16] 0.0, 128
    %58 = vxpose.xlu0.b32.cont [11/16] 0.0, 128
    %59 = vxpose.xlu0.b32.cont [12/16] 0.0, 128
    %60 = vxpose.xlu0.b32.cont [13/16] 0.0, 128
    %61 = vxpose.xlu0.b32.cont [14/16] 0.0, 128
    %62 = vxpose.xlu0.b32.cont [15/16] 0.0, 128
    %63 = vxpose.xlu0.b32.end [16/16] 0.0, 128
    %v64 = vpop.trf.xlu0
    %v65 = vpop.trf.xlu0
    %v66 = vpop.trf.xlu0
    %v67 = vpop.trf.xlu0
    %v68 = vpop.trf.xlu0
    %v69 = vpop.trf.xlu0
    %v70 = vpop.trf.xlu0
    %v71 = vpop.trf.xlu0
    %v72 = vpop.trf.xlu0
    %v73 = vpop.trf.xlu0
    %v74 = vpop.trf.xlu0
    %v75 = vpop.trf.xlu0
    %v76 = vpop.trf.xlu0
    %v77 = vpop.trf.xlu0
    %v78 = vpop.trf.xlu0
    %v79 = vpop.trf.xlu0
    %vm80 = vcmask 64512
    %v82 = vsel %vm80, %v64, 0
    %v85 = vsel %vm80, %v65, 0
    %v88 = vsel %vm80, %v66, 0
    %v91 = vsel %vm80, %v67, 0
    %v94 = vsel %vm80, %v68, 0
    %v97 = vsel %vm80, %v69, 0
    %v100 = vsel %vm80, %v70, 0
    %v103 = vsel %vm80, %v71, 0
    %v106 = vsel %vm80, %v72, 0
    %v109 = vsel %vm80, %v73, 0
    %v112 = vsel %vm80, %v74, 0
    %v115 = vsel %vm80, %v75, 0
    %v118 = vsel %vm80, %v76, 0
    %v121 = vsel %vm80, %v77, 0
    %v124 = vsel %vm80, %v78, 0
    %v127 = vsel %vm80, %v79, 0
    %129 = vmatprep.subr.mxu0 0.0
    %130 = vmatpush1.msra.mxu0 %v40
    %131 = vmatprep.subr.mxu0 0.0
    %132 = vmatpush1.msra.mxu0 0.0
    %133 = vmatprep.subr.mxu0 0.0
    %134 = vmatpush1.msra.mxu0 0.0
    %135 = vmatprep.subr.mxu0 0.0
    %136 = vmatpush1.msra.mxu0 0.0
    %137 = vmatprep.subr.mxu0 0.0
    %138 = vmatpush1.msra.mxu0 0.0
    %139 = vmatprep.subr.mxu0 0.0
    %140 = vmatpush1.msra.mxu0 0.0
    %141 = vmatprep.subr.mxu0 0.0
    %142 = vmatpush1.msra.mxu0 0.0
    %143 = vmatprep.subr.mxu0 0.0
    %144 = vmatpush1.msra.mxu0 0.0
    %145 = vmatprep.subr.mxu0 0.0
    %146 = vmatpush1.msra.mxu0 0.0
    %147 = vmatprep.subr.mxu0 0.0
    %148 = vmatpush1.msra.mxu0 0.0
    %149 = vmatprep.subr.mxu0 0.0
    %150 = vmatpush1.msra.mxu0 0.0
    %151 = vmatprep.subr.mxu0 0.0
    %152 = vmatpush1.msra.mxu0 0.0
    %153 = vmatprep.subr.mxu0 0.0
    %154 = vmatpush1.msra.mxu0 0.0
    %155 = vmatprep.subr.mxu0 0.0
    %156 = vmatpush1.msra.mxu0 0.0
    %157 = vmatprep.subr.mxu0 0.0
    %158 = vmatpush1.msra.mxu0 0.0
    %159 = vmatprep.subr.mxu0 0.0
    %160 = vmatpush1.msra.mxu0 0.0
    %161 = vmatprep.subr.mxu0 0.0
    %162 = vmatpush1.msra.mxu0 0.0
    %163 = vmatprep.subr.mxu0 0.0
    %164 = vmatpush1.msra.mxu0 0.0
    %165 = vmatprep.subr.mxu0 0.0
    %166 = vmatpush1.msra.mxu0 0.0
    %167 = vmatprep.subr.mxu0 0.0
    %168 = vmatpush1.msra.mxu0 0.0
    %169 = vmatprep.subr.mxu0 0.0
    %170 = vmatpush1.msra.mxu0 0.0
    %171 = vmatprep.subr.mxu0 0.0
    %172 = vmatpush1.msra.mxu0 0.0
    %173 = vmatprep.subr.mxu0 0.0
    %174 = vmatpush1.msra.mxu0 0.0
    %175 = vmatprep.subr.mxu0 0.0
    %176 = vmatpush1.msra.mxu0 0.0
    %177 = vmatprep.subr.mxu0 0.0
    %178 = vmatpush1.msra.mxu0 0.0
    %179 = vmatprep.subr.mxu0 0.0
    %180 = vmatpush1.msra.mxu0 0.0
    %181 = vmatprep.subr.mxu0 0.0
    %182 = vmatpush1.msra.mxu0 0.0
    %183 = vmatprep.subr.mxu0 0.0
    %184 = vmatpush1.msra.mxu0 0.0
    %185 = vmatprep.subr.mxu0 0.0
    %186 = vmatpush1.msra.mxu0 0.0
    %187 = vmatprep.subr.mxu0 0.0
    %188 = vmatpush1.msra.mxu0 0.0
    %189 = vmatprep.subr.mxu0 0.0
    %190 = vmatpush1.msra.mxu0 0.0
    %191 = vmatprep.subr.mxu0 0.0
    %192 = vmatpush1.msra.mxu0 0.0
    %193 = vmatprep.mubr.f32.mxu0 0.0
    %194 = vmatmul.mubr.f32.gmra.mrb[0].mxu0 %v82
    %v195 = vpop.f32.mrb[0].mxu0
    %v196 = vadd.f32 %v46, %v195
    %v197 = vpop.f32.mrb[0].mxu0
    %198 = vmatprep.mubr.f32.mxu0 0.0
    %199 = vmatmul.mubr.f32.gmra.mrb[0].mxu0 %v85
    %v200 = vpop.f32.mrb[0].mxu0
    %v201 = vadd.f32 %v46, %v200
    %v202 = vpop.f32.mrb[0].mxu0
    %203 = vmatprep.mubr.f32.mxu0 0.0
    %204 = vmatmul.mubr.f32.gmra.mrb[0].mxu0 %v88
    %v205 = vpop.f32.mrb[0].mxu0
    %v206 = vadd.f32 %v46, %v205
    %v207 = vpop.f32.mrb[0].mxu0
    %208 = vmatprep.mubr.f32.mxu0 0.0
    %209 = vmatmul.mubr.f32.gmra.mrb[0].mxu0 %v91
    %v210 = vpop.f32.mrb[0].mxu0
    %v211 = vadd.f32 %v46, %v210
    %v212 = vpop.f32.mrb[0].mxu0
    %213 = vmatprep.mubr.f32.mxu0 0.0
    %214 = vmatmul.mubr.f32.gmra.mrb[0].mxu0 %v94
    %v215 = vpop.f32.mrb[0].mxu0
    %v216 = vadd.f32 %v46, %v215
    %v217 = vpop.f32.mrb[0].mxu0
    %218 = vmatprep.mubr.f32.mxu0 0.0
    %219 = vmatmul.mubr.f32.gmra.mrb[0].mxu0 %v97
    %v220 = vpop.f32.mrb[0].mxu0
    %v221 = vadd.f32 %v46, %v220
    %v222 = vpop.f32.mrb[0].mxu0
    %223 = vmatprep.mubr.f32.mxu0 0.0
    %224 = vmatmul.mubr.f32.gmra.mrb[0].mxu0 %v100
    %v225 = vpop.f32.mrb[0].mxu0
    %v226 = vadd.f32 %v46, %v225
    %v227 = vpop.f32.mrb[0].mxu0
    %228 = vmatprep.mubr.f32.mxu0 0.0
    %229 = vmatmul.mubr.f32.gmra.mrb[0].mxu0 %v103
    %v230 = vpop.f32.mrb[0].mxu0
    %v231 = vadd.f32 %v46, %v230
    %v232 = vpop.f32.mrb[0].mxu0
    %233 = vmatprep.mubr.f32.mxu0 0.0
    %234 = vmatmul.mubr.f32.gmra.mrb[0].mxu0 %v106
    %v235 = vpop.f32.mrb[0].mxu0
    %v236 = vadd.f32 %v46, %v235
    %v237 = vpop.f32.mrb[0].mxu0
    %238 = vmatprep.mubr.f32.mxu0 0.0
    %239 = vmatmul.mubr.f32.gmra.mrb[0].mxu0 %v109
    %v240 = vpop.f32.mrb[0].mxu0
    %v241 = vadd.f32 %v46, %v240
    %v242 = vpop.f32.mrb[0].mxu0
    %243 = vmatprep.mubr.f32.mxu0 0.0
    %244 = vmatmul.mubr.f32.gmra.mrb[0].mxu0 %v112
    %v245 = vpop.f32.mrb[0].mxu0
    %v246 = vadd.f32 %v46, %v245
    %v247 = vpop.f32.mrb[0].mxu0
    %248 = vmatprep.mubr.f32.mxu0 0.0
    %249 = vmatmul.mubr.f32.gmra.mrb[0].mxu0 %v115
    %v250 = vpop.f32.mrb[0].mxu0
    %v251 = vadd.f32 %v46, %v250
    %v252 = vpop.f32.mrb[0].mxu0
    %253 = vmatprep.mubr.f32.mxu0 0.0
    %254 = vmatmul.mubr.f32.gmra.mrb[0].mxu0 %v118
    %v255 = vpop.f32.mrb[0].mxu0
    %v256 = vadd.f32 %v46, %v255
    %v257 = vpop.f32.mrb[0].mxu0
    %258 = vmatprep.mubr.f32.mxu0 0.0
    %259 = vmatmul.mubr.f32.gmra.mrb[0].mxu0 %v121
    %v260 = vpop.f32.mrb[0].mxu0
    %v261 = vadd.f32 %v46, %v260
    %v262 = vpop.f32.mrb[0].mxu0
    %263 = vmatprep.mubr.f32.mxu0 0.0
    %264 = vmatmul.mubr.f32.gmra.mrb[0].mxu0 %v124
    %v265 = vpop.f32.mrb[0].mxu0
    %v266 = vadd.f32 %v46, %v265
    %v267 = vpop.f32.mrb[0].mxu0
    %268 = vmatprep.mubr.f32.mxu0 0.0
    %269 = vmatmul.mubr.f32.gmra.mrb[0].mxu0 %v127
    %v270 = vpop.f32.mrb[0].mxu0
    %v271 = vadd.f32 %v46, %v270
    %v272 = vpop.f32.mrb[0].mxu0
    %273 = vdwg.mxu0
    %274 = vst [vmem:[#allocation7] sm:$0xff] %v196
    %275 = vst [vmem:[#allocation7 + $0x8] sm:$0xff] %v201
    %276 = vst [vmem:[#allocation7 + $0x10] sm:$0xff] %v206
    %277 = vst [vmem:[#allocation7 + $0x18] sm:$0xff] %v211
    %278 = vst [vmem:[#allocation7 + $0x20] sm:$0xff] %v216
    %279 = vst [vmem:[#allocation7 + $0x28] sm:$0xff] %v221
    %280 = vst [vmem:[#allocation7 + $0x30] sm:$0xff] %v226
    %281 = vst [vmem:[#allocation7 + $0x38] sm:$0xff] %v231
    %282 = vst [vmem:[#allocation7 + $0x40] sm:$0xff] %v236
    %283 = vst [vmem:[#allocation7 + $0x48] sm:$0xff] %v241
    %284 = vst [vmem:[#allocation7 + $0x50] sm:$0xff] %v246
    %285 = vst [vmem:[#allocation7 + $0x58] sm:$0xff] %v251
    %286 = vst [vmem:[#allocation7 + $0x60] sm:$0xff] %v256
    %287 = vst [vmem:[#allocation7 + $0x68] sm:$0xff] %v261
    %288 = vst [vmem:[#allocation7 + $0x70] sm:$0xff] %v266
    %289 = vst [vmem:[#allocation7 + $0x78] sm:$0xff] %v271
    // Predicated region
    $region22: #{tpu_custom_call.1} parent=1 // pred_check
      _
    $region23: #{tpu_custom_call.1} parent=1 // pred_check_branch
      %291 = sbr.rel (0) target = $region25
    $region24: #{tpu_custom_call.1} parent=1 // pred_region
      %s293 = ssub.s32 2048, 2048
      %294 = vsyncadd [#allocation4], %s293
      %s295 = sshll.u32 [#allocation7], 4
      %s296 = int_to_ptr.vmem [resolvable:$true] %s295
      %301 = dma.vmem_to_hbm [thread:$0]  %s296, 2048, %s3, [#allocation4], 128, 128, 8
    $region25: #{tpu_custom_call.1} parent=1 // pred_fallthru
      _
    // Predicated region
    $region26: #{tpu_custom_call.1} parent=1 // pred_check
      _
    $region27: #{tpu_custom_call.1} parent=1 // pred_check_branch
      %303 = sbr.rel (0) target = $region29
    $region28: #{tpu_custom_call.1} parent=1 // pred_region
      %304 = dma.done [#allocation4], 2048
    $region29: #{tpu_custom_call.1} parent=1 // pred_fallthru
      _
    %305 = vsyncpa [#allocation3], 1
    %306 = vsyncpa [#allocation6], 1
    %307 = vsyncpa [#allocation4], 1

</llo_original>
